<compile_context>
chip_gen: v6e
topology: v6e:2x2x1
jax: 0.10.0
libtpu: 0.0.40
codegen_flags: <defaults>
</compile_context>

<pallas_src>
import math

import jax
import jax.numpy as jnp
from jax.experimental import pallas as pl
from jax.experimental.pallas import tpu as pltpu


# ----------------------------------------------------------------------------
# Fused kernel: per (row-tile, head) grid step
# ----------------------------------------------------------------------------
def fused_align_kernel(x_ref, src_ref, val_ref,
                       wq_ref, bq_ref, wk_ref, bk_ref, wv_ref, bv_ref,
                       wo_ref, bo_ref,
                       o_ref, acc_ref):
    h = pl.program_id(1)

    @pl.when(h == 0)
    def _init():
        acc_ref[...] = jnp.zeros_like(acc_ref)

    e = wq_ref.shape[-1]
    scale = 1.0 / math.sqrt(e)

    # ---- Q projection for this head (rows = all batches * queries) ----------
    q = jnp.dot(x_ref[...], wq_ref[0], preferred_element_type=jnp.float32)
    q = (q + bq_ref[0]) * scale                                   # (tm, E)

    # ---- K / V projections for this head (shared across all row tiles) ------
    k = jnp.dot(src_ref[...], wk_ref[0],
                preferred_element_type=jnp.float32) + bk_ref[0]   # (S, E)
    v = jnp.dot(val_ref[...], wv_ref[0],
                preferred_element_type=jnp.float32) + bv_ref[0]   # (S, E)

    # ---- scores / softmax: contract E with E -> no transpose of K -----------
    s = jax.lax.dot_general(q, k, (((1,), (1,)), ((), ())),
                            preferred_element_type=jnp.float32)   # (tm, S)
    m = jnp.max(s, axis=-1, keepdims=True)
    p = jnp.exp(s - m)
    denom = jnp.sum(p, axis=-1, keepdims=True)                    # (tm, 1)
    # TODO(synk): attention dropout (p=0.1) omitted (eval semantics).

    ctx = jnp.dot(p, v, preferred_element_type=jnp.float32)       # (tm, E)
    ctx = ctx * (1.0 / denom)        # fold softmax norm into small (tm,E) ctx

    # ---- accumulate this head's slice of the output projection --------------
    acc_ref[...] += jnp.dot(ctx, wo_ref[0],
                            preferred_element_type=jnp.float32)   # (tm, d_llm)

    @pl.when(h == pl.num_programs(1) - 1)
    def _finalize():
        o_ref[...] = (acc_ref[...] + bo_ref[...]).astype(o_ref.dtype)


def feature_alignment_forward(x2d, src, val,
                              wq3, bq3, wk3, bk3, wv3, bv3, wo3, bo2,
                              *, row_tile=256):
    """x2d: (B*L, d_model); src/val: (S, d_llm).  Returns (B*L, d_llm)."""
    n_rows, d_model = x2d.shape
    s_len, d_llm_in = src.shape
    n_heads, _, d_keys = wq3.shape
    d_llm = wo3.shape[-1]

    tm = n_rows if n_rows <= row_tile else row_tile   # full dim or multiple of 8
    grid = (pl.cdiv(n_rows, tm), n_heads)

    grid_spec = pltpu.PrefetchScalarGridSpec(
        num_scalar_prefetch=0,
        grid=grid,
        in_specs=[
            pl.BlockSpec((tm, d_model), lambda r, h: (r, 0)),        # x
            pl.BlockSpec((s_len, d_llm_in), lambda r, h: (0, 0)),    # source
            pl.BlockSpec((s_len, d_llm_in), lambda r, h: (0, 0)),    # value
            pl.BlockSpec((1, d_model, d_keys), lambda r, h: (h, 0, 0)),   # Wq_h
            pl.BlockSpec((1, 1, d_keys), lambda r, h: (h, 0, 0)),         # bq_h
            pl.BlockSpec((1, d_llm_in, d_keys), lambda r, h: (h, 0, 0)),  # Wk_h
            pl.BlockSpec((1, 1, d_keys), lambda r, h: (h, 0, 0)),         # bk_h
            pl.BlockSpec((1, d_llm_in, d_keys), lambda r, h: (h, 0, 0)),  # Wv_h
            pl.BlockSpec((1, 1, d_keys), lambda r, h: (h, 0, 0)),         # bv_h
            pl.BlockSpec((1, d_keys, d_llm), lambda r, h: (h, 0, 0)),     # Wo_h
            pl.BlockSpec((1, d_llm), lambda r, h: (0, 0)),                # bo
        ],
        out_specs=pl.BlockSpec((tm, d_llm), lambda r, h: (r, 0)),
        scratch_shapes=[pltpu.VMEM((tm, d_llm), jnp.float32)],
    )

    return pl.pallas_call(
        fused_align_kernel,
        out_shape=jax.ShapeDtypeStruct((n_rows, d_llm), x2d.dtype),
        grid_spec=grid_spec,
        compiler_params=pltpu.CompilerParams(
            dimension_semantics=("parallel", "arbitrary")),
    )(x2d, src, val, wq3, bq3, wk3, bk3, wv3, bv3, wo3, bo2)


# ----------------------------------------------------------------------------
# Module
# ----------------------------------------------------------------------------
class FeatureAlignmentLayer:
    def __init__(self, d_model, n_heads, d_keys=None, d_llm=None, key=None):
        d_keys = d_keys or d_model // n_heads
        self.n_heads = n_heads
        self.d_keys = d_keys
        self.d_model = d_model
        self.d_llm = d_llm

        dk = d_keys * n_heads
        key = key if key is not None else jax.random.PRNGKey(0)
        ks = jax.random.split(key, 8)

        def init_linear(kw, kb, dout, din):
            bound = 1.0 / math.sqrt(din)
            w = jax.random.uniform(kw, (dout, din), jnp.float32, -bound, bound)
            b = jax.random.uniform(kb, (dout,), jnp.float32, -bound, bound)
            return w, b

        # canonical (PyTorch-layout) parameters
        self.wq, self.bq = init_linear(ks[0], ks[1], dk, d_model)
        self.wk, self.bk = init_linear(ks[2], ks[3], dk, d_llm)
        self.wv, self.bv = init_linear(ks[4], ks[5], dk, d_llm)
        self.wo, self.bo = init_linear(ks[6], ks[7], d_llm, dk)

        # kernel layouts: pre-transposed / head-sliced ONCE at init (weights are
        # tiny -- avoids any in-kernel `.T` and any activation transposes).
        H, E = n_heads, d_keys
        self.wq3 = self.wq.reshape(H, E, d_model).swapaxes(1, 2)   # (H, d_model, E)
        self.bq3 = self.bq.reshape(H, 1, E)
        self.wk3 = self.wk.reshape(H, E, d_llm).swapaxes(1, 2)     # (H, d_llm, E)
        self.bk3 = self.bk.reshape(H, 1, E)
        self.wv3 = self.wv.reshape(H, E, d_llm).swapaxes(1, 2)     # (H, d_llm, E)
        self.bv3 = self.bv.reshape(H, 1, E)
        self.wo3 = self.wo.T.reshape(H, E, d_llm)                  # (H, E, d_llm)
        self.bo2 = self.bo.reshape(1, d_llm)

    def __call__(self, target_embedding, source_embedding, value_embedding):
        B, L, _ = target_embedding.shape
        x2d = target_embedding.reshape(B * L, self.d_model)        # free reshape
        out2d = feature_alignment_forward(
            x2d, source_embedding, value_embedding,
            self.wq3, self.bq3, self.wk3, self.bk3,
            self.wv3, self.bv3, self.wo3, self.bo2)
        return out2d.reshape(B, L, self.d_llm)


# ----------------------------------------------------------------------------
# Pure-JAX reference (PyTorch semantics) for the correctness check
# ----------------------------------------------------------------------------
def reference_forward(layer, target, source, value):
    B, L, _ = target.shape
    S, _ = source.shape
    H, E = layer.n_heads, layer.d_keys
    q = (target @ layer.wq.T + layer.bq).reshape(B, L, H, E)
    k = (source @ layer.wk.T + layer.bk).reshape(S, H, E)
    v = (value @ layer.wv.T + layer.bv).reshape(S, H, E)
    scale = 1.0 / math.sqrt(E)
    scores = jnp.einsum('blhe,she->bhls', q, k)
    a = jax.nn.softmax(scale * scores, axis=-1)
    out = jnp.einsum('bhls,she->blhe', a, v).reshape(B, L, H * E)
    return out @ layer.wo.T + layer.bo


if __name__ == "__main__":
    B, L, S = 2, 8, 16
    d_model, n_heads, d_llm = 32, 4, 48

    root = jax.random.PRNGKey(0)
    k_param, k_t, k_s = jax.random.split(root, 3)

    layer = FeatureAlignmentLayer(d_model, n_heads, d_llm=d_llm, key=k_param)

    target = jax.random.normal(k_t, (B, L, d_model), jnp.float32)
    source = jax.random.normal(k_s, (S, d_llm), jnp.float32)
    value = source  # module is typically called with value == source embedding

    out = layer(target, source, value)
    out = jax.block_until_ready(out)

    ref = reference_forward(layer, target, source, value)
    assert out.shape == (B, L, d_llm)
    assert jnp.allclose(out, ref, atol=1e-4, rtol=1e-4)

    print("KERNEL_OK")
</pallas_src>

<mosaic_0001>
module attributes {stable_mosaic.version = 11 : i64} {
  func.func @fused_align_kernel(%arg0: i32, %arg1: i32, %arg2: memref<16x32xf32, #tpu.memory_space<vmem>>, %arg3: memref<16x48xf32, #tpu.memory_space<vmem>>, %arg4: memref<16x48xf32, #tpu.memory_space<vmem>>, %arg5: memref<1x32x8xf32, #tpu.memory_space<vmem>>, %arg6: memref<1x1x8xf32, #tpu.memory_space<vmem>>, %arg7: memref<1x48x8xf32, #tpu.memory_space<vmem>>, %arg8: memref<1x1x8xf32, #tpu.memory_space<vmem>>, %arg9: memref<1x48x8xf32, #tpu.memory_space<vmem>>, %arg10: memref<1x1x8xf32, #tpu.memory_space<vmem>>, %arg11: memref<1x8x48xf32, #tpu.memory_space<vmem>>, %arg12: memref<1x48xf32, #tpu.memory_space<vmem>>, %arg13: memref<16x48xf32, #tpu.memory_space<vmem>>, %arg14: memref<16x48xf32, #tpu.memory_space<vmem>>) attributes {dimension_semantics = [#tpu.dimension_semantics<parallel>, #tpu.dimension_semantics<arbitrary>], iteration_bounds = array<i64: 1, 4>, scalar_prefetch = 0 : i64, scratch_operands = 1 : i64, tpu.core_type = #tpu.core_type<tc>, window_params = [{transform_indices = @transform_0, window_bounds = array<i64: 16, 32>}, {pipeline_mode = #tpu.pipeline_mode<synchronous>, transform_indices = @transform_1, window_bounds = array<i64: 16, 48>}, {pipeline_mode = #tpu.pipeline_mode<synchronous>, transform_indices = @transform_2, window_bounds = array<i64: 16, 48>}, {transform_indices = @transform_3, window_bounds = array<i64: 1, 32, 8>}, {transform_indices = @transform_4, window_bounds = array<i64: 1, 1, 8>}, {transform_indices = @transform_5, window_bounds = array<i64: 1, 48, 8>}, {transform_indices = @transform_6, window_bounds = array<i64: 1, 1, 8>}, {transform_indices = @transform_7, window_bounds = array<i64: 1, 48, 8>}, {transform_indices = @transform_8, window_bounds = array<i64: 1, 1, 8>}, {transform_indices = @transform_9, window_bounds = array<i64: 1, 8, 48>}, {pipeline_mode = #tpu.pipeline_mode<synchronous>, transform_indices = @transform_10, window_bounds = array<i64: 1, 48>}, {transform_indices = @transform_11, window_bounds = array<i64: 16, 48>}]} {
    %c0_i32 = arith.constant 0 : i32
    %0 = arith.cmpi eq, %arg1, %c0_i32 : i32
    %1 = arith.extui %0 : i1 to i32
    %c0_i32_0 = arith.constant 0 : i32
    %2 = arith.cmpi ne, %1, %c0_i32_0 : i32
    scf.if %2 {
      %cst_41 = arith.constant 0.000000e+00 : f32
      %51 = vector.broadcast %cst_41 : f32 to vector<16x48xf32>
      %c0_42 = arith.constant 0 : index
      %c0_43 = arith.constant 0 : index
      %52 = vector.load %arg14[%c0_42, %c0_43] : memref<16x48xf32, #tpu.memory_space<vmem>>, vector<16x48xf32>
      tpu.vector_store %arg14[%c0_42, %c0_43], %51 {strides = array<i32>} : memref<16x48xf32, #tpu.memory_space<vmem>>, vector<16x48xf32>,
    } else {
    }
    %c0 = arith.constant 0 : index
    %c0_1 = arith.constant 0 : index
    %3 = vector.load %arg2[%c0, %c0_1] : memref<16x32xf32, #tpu.memory_space<vmem>>, vector<16x32xf32>
    %c0_2 = arith.constant 0 : index
    %c0_3 = arith.constant 0 : index
    %c0_4 = arith.constant 0 : index
    %4 = vector.load %arg5[%c0_2, %c0_3, %c0_4] : memref<1x32x8xf32, #tpu.memory_space<vmem>>, vector<1x32x8xf32>
    %5 = vector.shape_cast %4 : vector<1x32x8xf32> to vector<32x8xf32>
    %cst = arith.constant dense<0.000000e+00> : vector<16x8xf32>
    %6 = tpu.matmul %3, %5, %cst {dimension_numbers = #tpu.dot_dimension_numbers<[1], [0], [0], [1], [0, 0, 1, 1], [], []>} : vector<16x32xf32>, vector<32x8xf32>, vector<16x8xf32> -> vector<16x8xf32>
    %c0_5 = arith.constant 0 : index
    %c0_6 = arith.constant 0 : index
    %c0_7 = arith.constant 0 : index
    %7 = vector.load %arg6[%c0_5, %c0_6, %c0_7] : memref<1x1x8xf32, #tpu.memory_space<vmem>>, vector<1x1x8xf32>
    %8 = vector.shape_cast %7 : vector<1x1x8xf32> to vector<1x8xf32>
    %9 = vector.broadcast %8 : vector<1x8xf32> to vector<16x8xf32>
    %10 = arith.addf %6, %9 : vector<16x8xf32>
    %cst_8 = arith.constant 0.353553385 : f32
    %11 = vector.broadcast %cst_8 : f32 to vector<16x8xf32>
    %12 = arith.mulf %10, %11 : vector<16x8xf32>
    %c0_9 = arith.constant 0 : index
    %c0_10 = arith.constant 0 : index
    %13 = vector.load %arg3[%c0_9, %c0_10] : memref<16x48xf32, #tpu.memory_space<vmem>>, vector<16x48xf32>
    %c0_11 = arith.constant 0 : index
    %c0_12 = arith.constant 0 : index
    %c0_13 = arith.constant 0 : index
    %14 = vector.load %arg7[%c0_11, %c0_12, %c0_13] : memref<1x48x8xf32, #tpu.memory_space<vmem>>, vector<1x48x8xf32>
    %15 = vector.shape_cast %14 : vector<1x48x8xf32> to vector<48x8xf32>
    %cst_14 = arith.constant dense<0.000000e+00> : vector<16x8xf32>
    %16 = tpu.matmul %13, %15, %cst_14 {dimension_numbers = #tpu.dot_dimension_numbers<[1], [0], [0], [1], [0, 0, 1, 1], [], []>} : vector<16x48xf32>, vector<48x8xf32>, vector<16x8xf32> -> vector<16x8xf32>
    %c0_15 = arith.constant 0 : index
    %c0_16 = arith.constant 0 : index
    %c0_17 = arith.constant 0 : index
    %17 = vector.load %arg8[%c0_15, %c0_16, %c0_17] : memref<1x1x8xf32, #tpu.memory_space<vmem>>, vector<1x1x8xf32>
    %18 = vector.shape_cast %17 : vector<1x1x8xf32> to vector<1x8xf32>
    %19 = vector.broadcast %18 : vector<1x8xf32> to vector<16x8xf32>
    %20 = arith.addf %16, %19 : vector<16x8xf32>
    %c0_18 = arith.constant 0 : index
    %c0_19 = arith.constant 0 : index
    %21 = vector.load %arg4[%c0_18, %c0_19] : memref<16x48xf32, #tpu.memory_space<vmem>>, vector<16x48xf32>
    %c0_20 = arith.constant 0 : index
    %c0_21 = arith.constant 0 : index
    %c0_22 = arith.constant 0 : index
    %22 = vector.load %arg9[%c0_20, %c0_21, %c0_22] : memref<1x48x8xf32, #tpu.memory_space<vmem>>, vector<1x48x8xf32>
    %23 = vector.shape_cast %22 : vector<1x48x8xf32> to vector<48x8xf32>
    %cst_23 = arith.constant dense<0.000000e+00> : vector<16x8xf32>
    %24 = tpu.matmul %21, %23, %cst_23 {dimension_numbers = #tpu.dot_dimension_numbers<[1], [0], [0], [1], [0, 0, 1, 1], [], []>} : vector<16x48xf32>, vector<48x8xf32>, vector<16x8xf32> -> vector<16x8xf32>
    %c0_24 = arith.constant 0 : index
    %c0_25 = arith.constant 0 : index
    %c0_26 = arith.constant 0 : index
    %25 = vector.load %arg10[%c0_24, %c0_25, %c0_26] : memref<1x1x8xf32, #tpu.memory_space<vmem>>, vector<1x1x8xf32>
    %26 = vector.shape_cast %25 : vector<1x1x8xf32> to vector<1x8xf32>
    %27 = vector.broadcast %26 : vector<1x8xf32> to vector<16x8xf32>
    %28 = arith.addf %24, %27 : vector<16x8xf32>
    %cst_27 = arith.constant dense<0.000000e+00> : vector<16x16xf32>
    %29 = tpu.matmul %12, %20, %cst_27 {dimension_numbers = #tpu.dot_dimension_numbers<[1], [1], [0], [0], [0, 0, 1, 0], [], []>} : vector<16x8xf32>, vector<16x8xf32>, vector<16x16xf32> -> vector<16x16xf32>
    %cst_28 = arith.constant dense<0xFF800000> : vector<16xf32>
    %30 = vector.multi_reduction <maximumf>, %29, %cst_28 [1] : vector<16x16xf32> to vector<16xf32>
    %31 = vector.shape_cast %30 : vector<16xf32> to vector<16x1xf32>
    %32 = vector.broadcast %31 : vector<16x1xf32> to vector<16x16xf32>
    %33 = arith.subf %29, %32 : vector<16x16xf32>
    %34 = math.exp %33 : vector<16x16xf32>
    %cst_29 = arith.constant dense<0.000000e+00> : vector<16xf32>
    %35 = vector.multi_reduction <add>, %34, %cst_29 [1] : vector<16x16xf32> to vector<16xf32>
    %36 = vector.shape_cast %35 : vector<16xf32> to vector<16x1xf32>
    %cst_30 = arith.constant dense<0.000000e+00> : vector<16x8xf32>
    %37 = tpu.matmul %34, %28, %cst_30 {dimension_numbers = #tpu.dot_dimension_numbers<[1], [0], [0], [1], [0, 0, 1, 1], [], []>} : vector<16x16xf32>, vector<16x8xf32>, vector<16x8xf32> -> vector<16x8xf32>
    %cst_31 = arith.constant 1.000000e+00 : f32
    %38 = vector.broadcast %cst_31 : f32 to vector<16x1xf32>
    %39 = arith.divf %38, %36 : vector<16x1xf32>
    %40 = vector.broadcast %39 : vector<16x1xf32> to vector<16x8xf32>
    %41 = arith.mulf %37, %40 : vector<16x8xf32>
    %c0_32 = arith.constant 0 : index
    %c0_33 = arith.constant 0 : index
    %42 = vector.load %arg14[%c0_32, %c0_33] : memref<16x48xf32, #tpu.memory_space<vmem>>, vector<16x48xf32>
    %c0_34 = arith.constant 0 : index
    %c0_35 = arith.constant 0 : index
    %c0_36 = arith.constant 0 : index
    %43 = vector.load %arg11[%c0_34, %c0_35, %c0_36] : memref<1x8x48xf32, #tpu.memory_space<vmem>>, vector<1x8x48xf32>
    %44 = vector.shape_cast %43 : vector<1x8x48xf32> to vector<8x48xf32>
    %cst_37 = arith.constant dense<0.000000e+00> : vector<16x48xf32>
    %45 = tpu.matmul %41, %44, %cst_37 {dimension_numbers = #tpu.dot_dimension_numbers<[1], [0], [0], [1], [0, 0, 1, 1], [], []>} : vector<16x8xf32>, vector<8x48xf32>, vector<16x48xf32> -> vector<16x48xf32>
    %46 = arith.addf %42, %45 : vector<16x48xf32>
    %c0_38 = arith.constant 0 : index
    %c0_39 = arith.constant 0 : index
    %47 = vector.load %arg14[%c0_38, %c0_39] : memref<16x48xf32, #tpu.memory_space<vmem>>, vector<16x48xf32>
    tpu.vector_store %arg14[%c0_38, %c0_39], %46 {strides = array<i32>} : memref<16x48xf32, #tpu.memory_space<vmem>>, vector<16x48xf32>,
    %c3_i32 = arith.constant 3 : i32
    %48 = arith.cmpi eq, %arg1, %c3_i32 : i32
    %49 = arith.extui %48 : i1 to i32
    %c0_i32_40 = arith.constant 0 : i32
    %50 = arith.cmpi ne, %49, %c0_i32_40 : i32
    scf.if %50 {
      %c0_41 = arith.constant 0 : index
      %c0_42 = arith.constant 0 : index
      %51 = vector.load %arg14[%c0_41, %c0_42] : memref<16x48xf32, #tpu.memory_space<vmem>>, vector<16x48xf32>
      %c0_43 = arith.constant 0 : index
      %c0_44 = arith.constant 0 : index
      %52 = vector.load %arg12[%c0_43, %c0_44] : memref<1x48xf32, #tpu.memory_space<vmem>>, vector<1x48xf32>
      %53 = vector.broadcast %52 : vector<1x48xf32> to vector<16x48xf32>
      %54 = arith.addf %51, %53 : vector<16x48xf32>
      %c0_45 = arith.constant 0 : index
      %c0_46 = arith.constant 0 : index
      %55 = vector.load %arg13[%c0_45, %c0_46] : memref<16x48xf32, #tpu.memory_space<vmem>>, vector<16x48xf32>
      tpu.vector_store %arg13[%c0_45, %c0_46], %54 {strides = array<i32>} : memref<16x48xf32, #tpu.memory_space<vmem>>, vector<16x48xf32>,
    } else {
    }
    return
  }
  func.func @transform_0(%arg0: i32, %arg1: i32) -> (i32, i32) {
    %c0_i32 = arith.constant 0 : i32
    %c0_i32_0 = arith.constant 0 : i32
    return %arg0, %c0_i32 : i32, i32
  }
  func.func @transform_1(%arg0: i32, %arg1: i32) -> (i32, i32) {
    %c0_i32 = arith.constant 0 : i32
    %c0_i32_0 = arith.constant 0 : i32
    %c0_i32_1 = arith.constant 0 : i32
    return %c0_i32, %c0_i32_0 : i32, i32
  }
  func.func @transform_2(%arg0: i32, %arg1: i32) -> (i32, i32) {
    %c0_i32 = arith.constant 0 : i32
    %c0_i32_0 = arith.constant 0 : i32
    %c0_i32_1 = arith.constant 0 : i32
    return %c0_i32, %c0_i32_0 : i32, i32
  }
  func.func @transform_3(%arg0: i32, %arg1: i32) -> (i32, i32, i32) {
    %c0_i32 = arith.constant 0 : i32
    %c0_i32_0 = arith.constant 0 : i32
    %c0_i32_1 = arith.constant 0 : i32
    return %arg1, %c0_i32, %c0_i32_0 : i32, i32, i32
  }
  func.func @transform_4(%arg0: i32, %arg1: i32) -> (i32, i32, i32) {
    %c0_i32 = arith.constant 0 : i32
    %c0_i32_0 = arith.constant 0 : i32
    %c0_i32_1 = arith.constant 0 : i32
    return %arg1, %c0_i32, %c0_i32_0 : i32, i32, i32
  }
  func.func @transform_5(%arg0: i32, %arg1: i32) -> (i32, i32, i32) {
    %c0_i32 = arith.constant 0 : i32
    %c0_i32_0 = arith.constant 0 : i32
    %c0_i32_1 = arith.constant 0 : i32
    return %arg1, %c0_i32, %c0_i32_0 : i32, i32, i32
  }
  func.func @transform_6(%arg0: i32, %arg1: i32) -> (i32, i32, i32) {
    %c0_i32 = arith.constant 0 : i32
    %c0_i32_0 = arith.constant 0 : i32
    %c0_i32_1 = arith.constant 0 : i32
    return %arg1, %c0_i32, %c0_i32_0 : i32, i32, i32
  }
  func.func @transform_7(%arg0: i32, %arg1: i32) -> (i32, i32, i32) {
    %c0_i32 = arith.constant 0 : i32
    %c0_i32_0 = arith.constant 0 : i32
    %c0_i32_1 = arith.constant 0 : i32
    return %arg1, %c0_i32, %c0_i32_0 : i32, i32, i32
  }
  func.func @transform_8(%arg0: i32, %arg1: i32) -> (i32, i32, i32) {
    %c0_i32 = arith.constant 0 : i32
    %c0_i32_0 = arith.constant 0 : i32
    %c0_i32_1 = arith.constant 0 : i32
    return %arg1, %c0_i32, %c0_i32_0 : i32, i32, i32
  }
  func.func @transform_9(%arg0: i32, %arg1: i32) -> (i32, i32, i32) {
    %c0_i32 = arith.constant 0 : i32
    %c0_i32_0 = arith.constant 0 : i32
    %c0_i32_1 = arith.constant 0 : i32
    return %arg1, %c0_i32, %c0_i32_0 : i32, i32, i32
  }
  func.func @transform_10(%arg0: i32, %arg1: i32) -> (i32, i32) {
    %c0_i32 = arith.constant 0 : i32
    %c0_i32_0 = arith.constant 0 : i32
    %c0_i32_1 = arith.constant 0 : i32
    return %c0_i32, %c0_i32_0 : i32, i32
  }
  func.func @transform_11(%arg0: i32, %arg1: i32) -> (i32, i32) {
    %c0_i32 = arith.constant 0 : i32
    %c0_i32_0 = arith.constant 0 : i32
    return %arg0, %c0_i32 : i32, i32
  }
}

</mosaic_0001>

<llo_original>
// kernel: tpu_custom_call.1
$region0: #{tpu_custom_call.1}
  #allocation0 [shape = 'u32[]', space=smem, size = 0x4, offset = 0x4, fixed_abs, tag = 'smem constant byte address 0x4 - core index']
  #allocation1 [shape = 'u32[144,128]{1,0:T(1,128)}', space=vmem, size = 0x12000, scoped, tag = 'internal scratch']
  #allocation2 [shape = 'f32[16,48]{1,0:T(8,128)}', space=vmem, size = 0x2000, scoped, tag = 'scratch operand']
  %s0 = inlined_call_operand.vmem [shape: f32[16,32], index: 0, kind: input, shape index: {}]
  %s1 = inlined_call_operand.vmem [shape: f32[16,48], index: 1, kind: input, shape index: {}]
  %s2 = inlined_call_operand.vmem [shape: f32[16,48], index: 2, kind: input, shape index: {}]
  %s3 = inlined_call_operand.vmem [shape: f32[4,32,8], index: 3, kind: input, shape index: {}]
  %s4 = inlined_call_operand.vmem [shape: f32[4,1,8], index: 4, kind: input, shape index: {}]
  %s5 = inlined_call_operand.vmem [shape: f32[4,48,8], index: 5, kind: input, shape index: {}]
  %s6 = inlined_call_operand.vmem [shape: f32[4,1,8], index: 6, kind: input, shape index: {}]
  %s7 = inlined_call_operand.vmem [shape: f32[4,48,8], index: 7, kind: input, shape index: {}]
  %s8 = inlined_call_operand.vmem [shape: f32[4,1,8], index: 8, kind: input, shape index: {}]
  %s9 = inlined_call_operand.vmem [shape: f32[4,8,48], index: 9, kind: input, shape index: {}]
  %s10 = inlined_call_operand.vmem [shape: f32[1,48], index: 10, kind: input, shape index: {}]
  %s11 = inlined_call_operand.hbm [shape: f32[16,48], index: 11, kind: output, shape index: {}]
  %s12 = sld [smem:[#allocation0]]
  $region85: #{tpu_custom_call.1} parent=0
    _
  %s14 = ssub.s32 1, %s12
  %s15 = scalar_select 0, %s14, %s12
  $region1: #{tpu_custom_call.1} parent=0
    #allocation3 [shape = 'u8[8192]{0}', space=vmem, size = 0x2000, scoped, tag = 'output window, operand 0, single buffered']
    #allocation4 [shape = 's32[2]{0}', space=sflag, size = 0x8, scoped, tag = 'scoped memory for tpu_custom_call.1']
    %16 = vsyncpa [#allocation4], 0
    loop: start=0, step=1, limit=6
    $region2: #{tpu_custom_call.1} parent=1 // loop_pre_header
      _
    $region3: #{tpu_custom_call.1} parent=1 // loop_header
      %s18 = sphi 0, %s22
      %p19 = scmp.ge.s32.totalorder %s18, 6
      %s25 = sphi 0, %s37
      %s26 = sphi 0, %s33
      %s27 = sphi 0, %s25
      %s28 = sphi 0, %s26
      %s29 = sphi 0, %s27
      %s30 = sphi 0, %s28
      %s40 = sphi 0, %s42
      %s43 = sphi 0, %s40
      %s44 = sphi 0, %s43
      %s60 = sphi 0, %s44
      %s64 = sphi 0, %s64
      %s66 = sphi 0, %s64
      %s67 = sphi 0, %s66
      %s81 = sphi 0, %s67
      %s85 = sphi 0, %s85
      %s87 = sphi 0, %s85
      %s88 = sphi 0, %s87
      %s102 = sphi 0, %s88
      %s108 = sphi 0, %s110
      %s111 = sphi 0, %s108
      %s112 = sphi 0, %s111
      %s128 = sphi 0, %s112
      %s134 = sphi 0, %s136
      %s137 = sphi 0, %s134
      %s138 = sphi 0, %s137
      %s154 = sphi 0, %s138
      %s160 = sphi 0, %s162
      %s163 = sphi 0, %s160
      %s164 = sphi 0, %s163
      %s180 = sphi 0, %s164
      %s186 = sphi 0, %s188
      %s189 = sphi 0, %s186
      %s190 = sphi 0, %s189
      %s206 = sphi 0, %s190
      %s212 = sphi 0, %s214
      %s215 = sphi 0, %s212
      %s216 = sphi 0, %s215
      %s232 = sphi 0, %s216
      %s238 = sphi 0, %s240
      %s241 = sphi 0, %s238
      %s242 = sphi 0, %s241
      %s258 = sphi 0, %s242
      %s264 = sphi 0, %s266
      %s267 = sphi 0, %s264
      %s268 = sphi 0, %s267
      %s284 = sphi 0, %s268
      %s288 = sphi 0, %s288
      %s290 = sphi 0, %s288
      %s291 = sphi 0, %s290
      %s305 = sphi 0, %s291
      %s311 = sphi 0, %s313
      %s314 = sphi 0, %s311
      %s315 = sphi 0, %s314
      %s331 = sphi 0, %s315
    $region4: #{tpu_custom_call.1} parent=1 // loop_header_branch
      %21 = sbr.rel (%p19) target = $region8
    $region5: #{tpu_custom_call.1} parent=1 // loop_body
      %s23 = ssub.s32 %s18, 1
      %s24 = ssub.s32 %s18, 2
      %s31 = sadd.s32 1, %s26
      %p32 = scmp.ge.s32.totalorder %s31, 4
      %s33 = scalar_select %p32, 0, %s31
      %s34 = sadd.s32 1, %s25
      %s35 = scalar_select %p32, %s34, %s25
      %p36 = scmp.ge.s32.totalorder %s35, 1
      %s37 = scalar_select %p36, 0, %s35
      %s38 = ssub.s32 %s25, %s37
      %p39 = scmp.eq.s32.totalorder %s38, 0
      %s41 = sadd.s32 %s40, 1
      %s42 = scalar_select %p39, %s40, %s41
      %p45 = pneg %p39
      %p46 = scmp.eq.s32.totalorder %s18, 3
      %p47 = por %p45, %p46
      %p48 = scmp.ne.s32.totalorder %s40, %s43
      %p49 = scmp.eq.s32.totalorder %s18, 0
      %p50 = por %p48, %p49
      %p51 = scmp.ne.s32.totalorder %s40, %s43
      %p52 = scmp.eq.s32.totalorder %s23, 3
      %p53 = por %p51, %p52
      %p54 = scmp.ne.s32.totalorder %s43, %s44
      %p55 = scmp.eq.s32.totalorder %s23, 0
      %p56 = por %p54, %p55
      %p57 = scmp.ne.s32.totalorder %s43, %s44
      %p58 = scmp.eq.s32.totalorder %s24, 3
      %p59 = por %p57, %p58
      %p61 = scmp.ne.s32.totalorder %s44, %s60
      %p62 = scmp.eq.s32.totalorder %s24, 0
      %p63 = por %p61, %p62
      %s65 = sadd.s32 %s64, 1
      %p68 = scmp.eq.s32.totalorder %s18, 3
      %p69 = scmp.ne.s32.totalorder %s64, %s66
      %p70 = scmp.eq.s32.totalorder %s18, 0
      %p71 = por %p69, %p70
      %p72 = scmp.ne.s32.totalorder %s64, %s66
      %p73 = scmp.eq.s32.totalorder %s23, 3
      %p74 = por %p72, %p73
      %p75 = scmp.ne.s32.totalorder %s66, %s67
      %p76 = scmp.eq.s32.totalorder %s23, 0
      %p77 = por %p75, %p76
      %p78 = scmp.ne.s32.totalorder %s66, %s67
      %p79 = scmp.eq.s32.totalorder %s24, 3
      %p80 = por %p78, %p79
      %p82 = scmp.ne.s32.totalorder %s67, %s81
      %p83 = scmp.eq.s32.totalorder %s24, 0
      %p84 = por %p82, %p83
      %s86 = sadd.s32 %s85, 1
      %p89 = scmp.eq.s32.totalorder %s18, 3
      %p90 = scmp.ne.s32.totalorder %s85, %s87
      %p91 = scmp.eq.s32.totalorder %s18, 0
      %p92 = por %p90, %p91
      %p93 = scmp.ne.s32.totalorder %s85, %s87
      %p94 = scmp.eq.s32.totalorder %s23, 3
      %p95 = por %p93, %p94
      %p96 = scmp.ne.s32.totalorder %s87, %s88
      %p97 = scmp.eq.s32.totalorder %s23, 0
      %p98 = por %p96, %p97
      %p99 = scmp.ne.s32.totalorder %s87, %s88
      %p100 = scmp.eq.s32.totalorder %s24, 3
      %p101 = por %p99, %p100
      %p103 = scmp.ne.s32.totalorder %s88, %s102
      %p104 = scmp.eq.s32.totalorder %s24, 0
      %p105 = por %p103, %p104
      %s106 = ssub.s32 %s26, %s33
      %p107 = scmp.eq.s32.totalorder %s106, 0
      %s109 = sadd.s32 %s108, 1
      %s110 = scalar_select %p107, %s108, %s109
      %p113 = pneg %p107
      %p114 = scmp.eq.s32.totalorder %s18, 3
      %p115 = por %p113, %p114
      %p116 = scmp.ne.s32.totalorder %s108, %s111
      %p117 = scmp.eq.s32.totalorder %s18, 0
      %p118 = por %p116, %p117
      %p119 = scmp.ne.s32.totalorder %s108, %s111
      %p120 = scmp.eq.s32.totalorder %s23, 3
      %p121 = por %p119, %p120
      %p122 = scmp.ne.s32.totalorder %s111, %s112
      %p123 = scmp.eq.s32.totalorder %s23, 0
      %p124 = por %p122, %p123
      %p125 = scmp.ne.s32.totalorder %s111, %s112
      %p126 = scmp.eq.s32.totalorder %s24, 3
      %p127 = por %p125, %p126
      %p129 = scmp.ne.s32.totalorder %s112, %s128
      %p130 = scmp.eq.s32.totalorder %s24, 0
      %p131 = por %p129, %p130
      %s132 = ssub.s32 %s26, %s33
      %p133 = scmp.eq.s32.totalorder %s132, 0
      %s135 = sadd.s32 %s134, 1
      %s136 = scalar_select %p133, %s134, %s135
      %p139 = pneg %p133
      %p140 = scmp.eq.s32.totalorder %s18, 3
      %p141 = por %p139, %p140
      %p142 = scmp.ne.s32.totalorder %s134, %s137
      %p143 = scmp.eq.s32.totalorder %s18, 0
      %p144 = por %p142, %p143
      %p145 = scmp.ne.s32.totalorder %s134, %s137
      %p146 = scmp.eq.s32.totalorder %s23, 3
      %p147 = por %p145, %p146
      %p148 = scmp.ne.s32.totalorder %s137, %s138
      %p149 = scmp.eq.s32.totalorder %s23, 0
      %p150 = por %p148, %p149
      %p151 = scmp.ne.s32.totalorder %s137, %s138
      %p152 = scmp.eq.s32.totalorder %s24, 3
      %p153 = por %p151, %p152
      %p155 = scmp.ne.s32.totalorder %s138, %s154
      %p156 = scmp.eq.s32.totalorder %s24, 0
      %p157 = por %p155, %p156
      %s158 = ssub.s32 %s26, %s33
      %p159 = scmp.eq.s32.totalorder %s158, 0
      %s161 = sadd.s32 %s160, 1
      %s162 = scalar_select %p159, %s160, %s161
      %p165 = pneg %p159
      %p166 = scmp.eq.s32.totalorder %s18, 3
      %p167 = por %p165, %p166
      %p168 = scmp.ne.s32.totalorder %s160, %s163
      %p169 = scmp.eq.s32.totalorder %s18, 0
      %p170 = por %p168, %p169
      %p171 = scmp.ne.s32.totalorder %s160, %s163
      %p172 = scmp.eq.s32.totalorder %s23, 3
      %p173 = por %p171, %p172
      %p174 = scmp.ne.s32.totalorder %s163, %s164
      %p175 = scmp.eq.s32.totalorder %s23, 0
      %p176 = por %p174, %p175
      %p177 = scmp.ne.s32.totalorder %s163, %s164
      %p178 = scmp.eq.s32.totalorder %s24, 3
      %p179 = por %p177, %p178
      %p181 = scmp.ne.s32.totalorder %s164, %s180
      %p182 = scmp.eq.s32.totalorder %s24, 0
      %p183 = por %p181, %p182
      %s184 = ssub.s32 %s26, %s33
      %p185 = scmp.eq.s32.totalorder %s184, 0
      %s187 = sadd.s32 %s186, 1
      %s188 = scalar_select %p185, %s186, %s187
      %p191 = pneg %p185
      %p192 = scmp.eq.s32.totalorder %s18, 3
      %p193 = por %p191, %p192
      %p194 = scmp.ne.s32.totalorder %s186, %s189
      %p195 = scmp.eq.s32.totalorder %s18, 0
      %p196 = por %p194, %p195
      %p197 = scmp.ne.s32.totalorder %s186, %s189
      %p198 = scmp.eq.s32.totalorder %s23, 3
      %p199 = por %p197, %p198
      %p200 = scmp.ne.s32.totalorder %s189, %s190
      %p201 = scmp.eq.s32.totalorder %s23, 0
      %p202 = por %p200, %p201
      %p203 = scmp.ne.s32.totalorder %s189, %s190
      %p204 = scmp.eq.s32.totalorder %s24, 3
      %p205 = por %p203, %p204
      %p207 = scmp.ne.s32.totalorder %s190, %s206
      %p208 = scmp.eq.s32.totalorder %s24, 0
      %p209 = por %p207, %p208
      %s210 = ssub.s32 %s26, %s33
      %p211 = scmp.eq.s32.totalorder %s210, 0
      %s213 = sadd.s32 %s212, 1
      %s214 = scalar_select %p211, %s212, %s213
      %p217 = pneg %p211
      %p218 = scmp.eq.s32.totalorder %s18, 3
      %p219 = por %p217, %p218
      %p220 = scmp.ne.s32.totalorder %s212, %s215
      %p221 = scmp.eq.s32.totalorder %s18, 0
      %p222 = por %p220, %p221
      %p223 = scmp.ne.s32.totalorder %s212, %s215
      %p224 = scmp.eq.s32.totalorder %s23, 3
      %p225 = por %p223, %p224
      %p226 = scmp.ne.s32.totalorder %s215, %s216
      %p227 = scmp.eq.s32.totalorder %s23, 0
      %p228 = por %p226, %p227
      %p229 = scmp.ne.s32.totalorder %s215, %s216
      %p230 = scmp.eq.s32.totalorder %s24, 3
      %p231 = por %p229, %p230
      %p233 = scmp.ne.s32.totalorder %s216, %s232
      %p234 = scmp.eq.s32.totalorder %s24, 0
      %p235 = por %p233, %p234
      %s236 = ssub.s32 %s26, %s33
      %p237 = scmp.eq.s32.totalorder %s236, 0
      %s239 = sadd.s32 %s238, 1
      %s240 = scalar_select %p237, %s238, %s239
      %p243 = pneg %p237
      %p244 = scmp.eq.s32.totalorder %s18, 3
      %p245 = por %p243, %p244
      %p246 = scmp.ne.s32.totalorder %s238, %s241
      %p247 = scmp.eq.s32.totalorder %s18, 0
      %p248 = por %p246, %p247
      %p249 = scmp.ne.s32.totalorder %s238, %s241
      %p250 = scmp.eq.s32.totalorder %s23, 3
      %p251 = por %p249, %p250
      %p252 = scmp.ne.s32.totalorder %s241, %s242
      %p253 = scmp.eq.s32.totalorder %s23, 0
      %p254 = por %p252, %p253
      %p255 = scmp.ne.s32.totalorder %s241, %s242
      %p256 = scmp.eq.s32.totalorder %s24, 3
      %p257 = por %p255, %p256
      %p259 = scmp.ne.s32.totalorder %s242, %s258
      %p260 = scmp.eq.s32.totalorder %s24, 0
      %p261 = por %p259, %p260
      %s262 = ssub.s32 %s26, %s33
      %p263 = scmp.eq.s32.totalorder %s262, 0
      %s265 = sadd.s32 %s264, 1
      %s266 = scalar_select %p263, %s264, %s265
      %p269 = pneg %p263
      %p270 = scmp.eq.s32.totalorder %s18, 3
      %p271 = por %p269, %p270
      %p272 = scmp.ne.s32.totalorder %s264, %s267
      %p273 = scmp.eq.s32.totalorder %s18, 0
      %p274 = por %p272, %p273
      %p275 = scmp.ne.s32.totalorder %s264, %s267
      %p276 = scmp.eq.s32.totalorder %s23, 3
      %p277 = por %p275, %p276
      %p278 = scmp.ne.s32.totalorder %s267, %s268
      %p279 = scmp.eq.s32.totalorder %s23, 0
      %p280 = por %p278, %p279
      %p281 = scmp.ne.s32.totalorder %s267, %s268
      %p282 = scmp.eq.s32.totalorder %s24, 3
      %p283 = por %p281, %p282
      %p285 = scmp.ne.s32.totalorder %s268, %s284
      %p286 = scmp.eq.s32.totalorder %s24, 0
      %p287 = por %p285, %p286
      %s289 = sadd.s32 %s288, 1
      %p292 = scmp.eq.s32.totalorder %s18, 3
      %p293 = scmp.ne.s32.totalorder %s288, %s290
      %p294 = scmp.eq.s32.totalorder %s18, 0
      %p295 = por %p293, %p294
      %p296 = scmp.ne.s32.totalorder %s288, %s290
      %p297 = scmp.eq.s32.totalorder %s23, 3
      %p298 = por %p296, %p297
      %p299 = scmp.ne.s32.totalorder %s290, %s291
      %p300 = scmp.eq.s32.totalorder %s23, 0
      %p301 = por %p299, %p300
      %p302 = scmp.ne.s32.totalorder %s290, %s291
      %p303 = scmp.eq.s32.totalorder %s24, 3
      %p304 = por %p302, %p303
      %p306 = scmp.ne.s32.totalorder %s291, %s305
      %p307 = scmp.eq.s32.totalorder %s24, 0
      %p308 = por %p306, %p307
      %s309 = ssub.s32 %s25, %s37
      %p310 = scmp.eq.s32.totalorder %s309, 0
      %s312 = sadd.s32 %s311, 1
      %s313 = scalar_select %p310, %s311, %s312
      %p316 = pneg %p310
      %p317 = scmp.eq.s32.totalorder %s18, 3
      %p318 = por %p316, %p317
      %p319 = scmp.ne.s32.totalorder %s311, %s314
      %p320 = scmp.eq.s32.totalorder %s18, 0
      %p321 = por %p319, %p320
      %p322 = scmp.ne.s32.totalorder %s311, %s314
      %p323 = scmp.eq.s32.totalorder %s23, 3
      %p324 = por %p322, %p323
      %p325 = scmp.ne.s32.totalorder %s314, %s315
      %p326 = scmp.eq.s32.totalorder %s23, 0
      %p327 = por %p325, %p326
      %p328 = scmp.ne.s32.totalorder %s314, %s315
      %p329 = scmp.eq.s32.totalorder %s24, 3
      %p330 = por %p328, %p329
      %p332 = scmp.ne.s32.totalorder %s315, %s331
      %p333 = scmp.eq.s32.totalorder %s24, 0
      %p334 = por %p332, %p333
      %p335 = scmp.le.s32.totalorder 1, %s18
      %p336 = scmp.lt.s32.totalorder %s18, 5
      %p337 = pnand %p335, %p336
      %p338 = pneg %p337
      // Predicated region
      $region9: #{tpu_custom_call.1} parent=5 // pred_check
        _
      $region10: #{tpu_custom_call.1} parent=5 // pred_check_branch
        %340 = sbr.rel (%p337) target = $region12
      $region11: #{tpu_custom_call.1} parent=5 // pred_region
        %s341 = ssub.s32 %s18, 1
        // Predicated region
        $region13: #{tpu_custom_call.1} parent=11 // pred_check
          %p342 = pneg %p56
        $region14: #{tpu_custom_call.1} parent=11 // pred_check_branch
          %344 = sbr.rel (%p342) target = $region16
        $region15: #{tpu_custom_call.1} parent=11 // pred_region
          %s345 = smul.u32 2, %s27
          %p346 = scmp.lt.s32.totalorder %s345, 1
          %s347 = scalar_select %p346, %s345, 1
          %s348 = smul.addr %s347, 8
          %s349 = scalar_lea.vmem %s0, %s348
          %s350 = smul.u32 2, %s27
        $region16: #{tpu_custom_call.1} parent=11 // pred_fallthru
          _
        // Predicated region
        $region17: #{tpu_custom_call.1} parent=11 // pred_check
          %p351 = pneg %p77
        $region18: #{tpu_custom_call.1} parent=11 // pred_check_branch
          %353 = sbr.rel (%p351) target = $region20
        $region19: #{tpu_custom_call.1} parent=11 // pred_region
          _
        $region20: #{tpu_custom_call.1} parent=11 // pred_fallthru
          _
        // Predicated region
        $region21: #{tpu_custom_call.1} parent=11 // pred_check
          %p354 = pneg %p98
        $region22: #{tpu_custom_call.1} parent=11 // pred_check_branch
          %356 = sbr.rel (%p354) target = $region24
        $region23: #{tpu_custom_call.1} parent=11 // pred_region
          _
        $region24: #{tpu_custom_call.1} parent=11 // pred_fallthru
          _
        // Predicated region
        $region25: #{tpu_custom_call.1} parent=11 // pred_check
          %p357 = pneg %p301
        $region26: #{tpu_custom_call.1} parent=11 // pred_check_branch
          %359 = sbr.rel (%p357) target = $region28
        $region27: #{tpu_custom_call.1} parent=11 // pred_region
          _
        $region28: #{tpu_custom_call.1} parent=11 // pred_fallthru
          _
      $region12: #{tpu_custom_call.1} parent=5 // pred_fallthru
        _
      %p360 = scmp.lt.s32.totalorder %s18, 4
      // Predicated region
      $region29: #{tpu_custom_call.1} parent=5 // pred_check
        %p361 = pneg %p360
      $region30: #{tpu_custom_call.1} parent=5 // pred_check_branch
        %363 = sbr.rel (%p361) target = $region32
      $region31: #{tpu_custom_call.1} parent=5 // pred_region
        // Predicated region
        $region33: #{tpu_custom_call.1} parent=31 // pred_check
          %p364 = pneg %p118
        $region34: #{tpu_custom_call.1} parent=31 // pred_check_branch
          %366 = sbr.rel (%p364) target = $region36
        $region35: #{tpu_custom_call.1} parent=31 // pred_region
          %p367 = scmp.lt.s32.totalorder %s26, 3
          %s368 = scalar_select %p367, %s26, 3
          %s369 = smul.addr %s368, 4
          %s370 = smul.addr %s369, 8
          %s371 = scalar_lea.vmem %s3, %s370
        $region36: #{tpu_custom_call.1} parent=31 // pred_fallthru
          _
        // Predicated region
        $region37: #{tpu_custom_call.1} parent=31 // pred_check
          %p372 = pneg %p144
        $region38: #{tpu_custom_call.1} parent=31 // pred_check_branch
          %374 = sbr.rel (%p372) target = $region40
        $region39: #{tpu_custom_call.1} parent=31 // pred_region
          %p375 = scmp.lt.s32.totalorder %s26, 3
          %s376 = scalar_select %p375, %s26, 3
          %s377 = scalar_lea.vmem %s4, %s376
        $region40: #{tpu_custom_call.1} parent=31 // pred_fallthru
          _
        // Predicated region
        $region41: #{tpu_custom_call.1} parent=31 // pred_check
          %p378 = pneg %p170
        $region42: #{tpu_custom_call.1} parent=31 // pred_check_branch
          %380 = sbr.rel (%p378) target = $region44
        $region43: #{tpu_custom_call.1} parent=31 // pred_region
          %p381 = scmp.lt.s32.totalorder %s26, 3
          %s382 = scalar_select %p381, %s26, 3
          %s383 = smul.addr %s382, 6
          %s384 = smul.addr %s383, 8
          %s385 = scalar_lea.vmem %s5, %s384
        $region44: #{tpu_custom_call.1} parent=31 // pred_fallthru
          _
        // Predicated region
        $region45: #{tpu_custom_call.1} parent=31 // pred_check
          %p386 = pneg %p196
        $region46: #{tpu_custom_call.1} parent=31 // pred_check_branch
          %388 = sbr.rel (%p386) target = $region48
        $region47: #{tpu_custom_call.1} parent=31 // pred_region
          %p389 = scmp.lt.s32.totalorder %s26, 3
          %s390 = scalar_select %p389, %s26, 3
          %s391 = scalar_lea.vmem %s6, %s390
        $region48: #{tpu_custom_call.1} parent=31 // pred_fallthru
          _
        // Predicated region
        $region49: #{tpu_custom_call.1} parent=31 // pred_check
          %p392 = pneg %p222
        $region50: #{tpu_custom_call.1} parent=31 // pred_check_branch
          %394 = sbr.rel (%p392) target = $region52
        $region51: #{tpu_custom_call.1} parent=31 // pred_region
          %p395 = scmp.lt.s32.totalorder %s26, 3
          %s396 = scalar_select %p395, %s26, 3
          %s397 = smul.addr %s396, 6
          %s398 = smul.addr %s397, 8
          %s399 = scalar_lea.vmem %s7, %s398
        $region52: #{tpu_custom_call.1} parent=31 // pred_fallthru
          _
        // Predicated region
        $region53: #{tpu_custom_call.1} parent=31 // pred_check
          %p400 = pneg %p248
        $region54: #{tpu_custom_call.1} parent=31 // pred_check_branch
          %402 = sbr.rel (%p400) target = $region56
        $region55: #{tpu_custom_call.1} parent=31 // pred_region
          %p403 = scmp.lt.s32.totalorder %s26, 3
          %s404 = scalar_select %p403, %s26, 3
          %s405 = scalar_lea.vmem %s8, %s404
        $region56: #{tpu_custom_call.1} parent=31 // pred_fallthru
          _
        // Predicated region
        $region57: #{tpu_custom_call.1} parent=31 // pred_check
          %p406 = pneg %p274
        $region58: #{tpu_custom_call.1} parent=31 // pred_check_branch
          %408 = sbr.rel (%p406) target = $region60
        $region59: #{tpu_custom_call.1} parent=31 // pred_region
          %p409 = scmp.lt.s32.totalorder %s26, 3
          %s410 = scalar_select %p409, %s26, 3
          %s411 = smul.addr %s410, 8
          %s412 = scalar_lea.vmem %s9, %s411
        $region60: #{tpu_custom_call.1} parent=31 // pred_fallthru
          _
      $region32: #{tpu_custom_call.1} parent=5 // pred_fallthru
        _
      %p413 = scmp.le.s32.totalorder 1, %s18
      %p414 = scmp.lt.s32.totalorder %s18, 5
      %p415 = pnand %p413, %p414
      %p416 = pneg %p415
      // Predicated region
      $region61: #{tpu_custom_call.1} parent=5 // pred_check
        _
      $region62: #{tpu_custom_call.1} parent=5 // pred_check_branch
        %418 = sbr.rel (%p415) target = $region64
      $region63: #{tpu_custom_call.1} parent=5 // pred_region
        %s419 = ssub.s32 %s18, 1
        %s420 = smul.u32 2, %s27
        %p421 = scmp.lt.s32.totalorder %s420, 1
        %s422 = scalar_select %p421, %s420, 1
        %s423 = smul.addr %s422, 8
        %s424 = scalar_lea.vmem %s0, %s423
        %p425 = pneg %p56
        %p426 = pneg %p53
        %p427 = pneg %p77
        %p428 = pneg %p74
        %p429 = pneg %p98
        %p430 = pneg %p95
        %p431 = scmp.lt.s32.totalorder %s28, 3
        %s432 = scalar_select %p431, %s28, 3
        %s433 = smul.addr %s432, 4
        %s434 = smul.addr %s433, 8
        %s435 = scalar_lea.vmem %s3, %s434
        %p436 = pneg %p124
        %p437 = pneg %p121
        %p438 = scmp.lt.s32.totalorder %s28, 3
        %s439 = scalar_select %p438, %s28, 3
        %s440 = scalar_lea.vmem %s4, %s439
        %p441 = pneg %p150
        %p442 = pneg %p147
        %p443 = scmp.lt.s32.totalorder %s28, 3
        %s444 = scalar_select %p443, %s28, 3
        %s445 = smul.addr %s444, 6
        %s446 = smul.addr %s445, 8
        %s447 = scalar_lea.vmem %s5, %s446
        %p448 = pneg %p176
        %p449 = pneg %p173
        %p450 = scmp.lt.s32.totalorder %s28, 3
        %s451 = scalar_select %p450, %s28, 3
        %s452 = scalar_lea.vmem %s6, %s451
        %p453 = pneg %p202
        %p454 = pneg %p199
        %p455 = scmp.lt.s32.totalorder %s28, 3
        %s456 = scalar_select %p455, %s28, 3
        %s457 = smul.addr %s456, 6
        %s458 = smul.addr %s457, 8
        %s459 = scalar_lea.vmem %s7, %s458
        %p460 = pneg %p228
        %p461 = pneg %p225
        %p462 = scmp.lt.s32.totalorder %s28, 3
        %s463 = scalar_select %p462, %s28, 3
        %s464 = scalar_lea.vmem %s8, %s463
        %p465 = pneg %p254
        %p466 = pneg %p251
        %p467 = scmp.lt.s32.totalorder %s28, 3
        %s468 = scalar_select %p467, %s28, 3
        %s469 = smul.addr %s468, 8
        %s470 = scalar_lea.vmem %s9, %s469
        %p471 = pneg %p280
        %p472 = pneg %p277
        %p473 = pneg %p301
        %p474 = pneg %p298
        %p475 = pneg %p327
        %p476 = pneg %p324
        %s477 = smul.u32 2, %s27
        %p478 = scmp.lt.s32.totalorder %s477, 1
        %s479 = scalar_select %p478, %s477, 1
        %s480 = smul.addr %s479, 8
        %s481 = scalar_lea.vmem %s0, %s480
        %s482 = smul.u32 2, %s27
        %p483 = scmp.lt.s32.totalorder %s28, 3
        %s484 = scalar_select %p483, %s28, 3
        %s485 = smul.addr %s484, 4
        %s486 = smul.addr %s485, 8
        %s487 = scalar_lea.vmem %s3, %s486
        %p488 = scmp.lt.s32.totalorder %s28, 3
        %s489 = scalar_select %p488, %s28, 3
        %s490 = scalar_lea.vmem %s4, %s489
        %p491 = scmp.lt.s32.totalorder %s28, 3
        %s492 = scalar_select %p491, %s28, 3
        %s493 = smul.addr %s492, 6
        %s494 = smul.addr %s493, 8
        %s495 = scalar_lea.vmem %s5, %s494
        %p496 = scmp.lt.s32.totalorder %s28, 3
        %s497 = scalar_select %p496, %s28, 3
        %s498 = scalar_lea.vmem %s6, %s497
        %p499 = scmp.lt.s32.totalorder %s28, 3
        %s500 = scalar_select %p499, %s28, 3
        %s501 = smul.addr %s500, 6
        %s502 = smul.addr %s501, 8
        %s503 = scalar_lea.vmem %s7, %s502
        %p504 = scmp.lt.s32.totalorder %s28, 3
        %s505 = scalar_select %p504, %s28, 3
        %s506 = scalar_lea.vmem %s8, %s505
        %p507 = scmp.lt.s32.totalorder %s28, 3
        %s508 = scalar_select %p507, %s28, 3
        %s509 = smul.addr %s508, 8
        %s510 = scalar_lea.vmem %s9, %s509
        %s511 = smul.u32 2, %s27
        %p512 = scmp.eq.s32.totalorder %s28, 0
        // Predicated region
        $region65: #{tpu_custom_call.1} parent=63 // pred_check
          %p513 = pneg %p512
        $region66: #{tpu_custom_call.1} parent=63 // pred_check_branch
          %515 = sbr.rel (%p513) target = $region68
        $region67: #{tpu_custom_call.1} parent=63 // pred_region
          %vm516 = vcmask 392192
          %517 = vst.msk [vmem:[#allocation2] sm:$0xff] %vm516, 0.0
          %518 = vst.msk [vmem:[#allocation2 + $0x8] sm:$0xff] %vm516, 0.0
        $region68: #{tpu_custom_call.1} parent=63 // pred_fallthru
          _
        %v519 = vld [vmem:[%s481] sm:$0xff]
        %v520 = vld [vmem:[%s481 + $0x8] sm:$0xff]
        %v521 = vld [vmem:[%s487] sm:$0xff]
        %v522 = vld [vmem:[%s487 + $0x8] sm:$0xff]
        %v523 = vld [vmem:[%s487 + $0x10] sm:$0xff]
        %v524 = vld [vmem:[%s487 + $0x18] sm:$0xff]
        %v525 = vld [vmem:[%s490] sm:$0x1]
        %v527 = vlaneseq
        %v528 = vshrl.u32 %v527, 7
        %v529 = vsub.s32 0, %v528
        %v530 = vrot.slane %v525, %v529
        %vm532 = vcmask 261120
        %v534 = vsel %vm532, %v519, 0
        %v537 = vsel %vm532, %v520, 0
        %539 = vmatprep.subr.mxu0 0.0
        %540 = vmatpush1.msra.mxu0 0.0
        %541 = vmatprep.subr.mxu0 0.0
        %542 = vmatpush1.msra.mxu0 0.0
        %543 = vmatprep.subr.mxu0 0.0
        %544 = vmatpush1.msra.mxu0 0.0
        %545 = vmatprep.subr.mxu0 0.0
        %546 = vmatpush1.msra.mxu0 0.0
        %547 = vmatprep.subr.mxu0 0.0
        %548 = vmatpush1.msra.mxu0 0.0
        %549 = vmatprep.subr.mxu0 0.0
        %550 = vmatpush1.msra.mxu0 0.0
        %551 = vmatprep.subr.mxu0 0.0
        %552 = vmatpush1.msra.mxu0 0.0
        %553 = vmatprep.subr.mxu0 0.0
        %554 = vmatpush1.msra.mxu0 0.0
        %555 = vmatprep.subr.mxu0 0.0
        %556 = vmatpush1.msra.mxu0 0.0
        %557 = vmatprep.subr.mxu0 0.0
        %558 = vmatpush1.msra.mxu0 0.0
        %559 = vmatprep.subr.mxu0 0.0
        %560 = vmatpush1.msra.mxu0 0.0
        %561 = vmatprep.subr.mxu0 0.0
        %562 = vmatpush1.msra.mxu0 0.0
        %563 = vmatprep.subr.mxu0 0.0
        %564 = vmatpush1.msra.mxu0 %v524
        %565 = vmatprep.subr.mxu0 0.0
        %566 = vmatpush1.msra.mxu0 %v523
        %567 = vmatprep.subr.mxu0 0.0
        %568 = vmatpush1.msra.mxu0 %v522
        %569 = vmatprep.subr.mxu0 0.0
        %570 = vmatpush1.msra.mxu0 %v521
        %571 = vmatprep.subr.mxu0 0.0
        %572 = vmatpush2.msra.mxu0 0.0
        %573 = vmatprep.subr.mxu0 0.0
        %574 = vmatpush2.msra.mxu0 0.0
        %575 = vmatprep.subr.mxu0 0.0
        %576 = vmatpush2.msra.mxu0 0.0
        %577 = vmatprep.subr.mxu0 0.0
        %578 = vmatpush2.msra.mxu0 0.0
        %579 = vmatprep.subr.mxu0 0.0
        %580 = vmatpush2.msra.mxu0 0.0
        %581 = vmatprep.subr.mxu0 0.0
        %582 = vmatpush2.msra.mxu0 0.0
        %583 = vmatprep.subr.mxu0 0.0
        %584 = vmatpush2.msra.mxu0 0.0
        %585 = vmatprep.subr.mxu0 0.0
        %586 = vmatpush2.msra.mxu0 0.0
        %587 = vmatprep.subr.mxu0 0.0
        %588 = vmatpush2.msra.mxu0 0.0
        %589 = vmatprep.subr.mxu0 0.0
        %590 = vmatpush2.msra.mxu0 0.0
        %591 = vmatprep.subr.mxu0 0.0
        %592 = vmatpush2.msra.mxu0 0.0
        %593 = vmatprep.subr.mxu0 0.0
        %594 = vmatpush2.msra.mxu0 0.0
        %595 = vmatprep.subr.mxu0 0.0
        %596 = vmatpush2.msra.mxu0 0.0
        %597 = vmatprep.subr.mxu0 0.0
        %598 = vmatpush2.msra.mxu0 0.0
        %599 = vmatprep.subr.mxu0 0.0
        %600 = vmatpush2.msra.mxu0 0.0
        %601 = vmatprep.subr.mxu0 0.0
        %602 = vmatpush2.msra.mxu0 0.0
        %603 = vmatprep.mubr.f32.mxu0 0.0
        %604 = vmatmul.mubr.f32.gmra.mxu0 %v534
        %v605 = vpop.f32.mrf.mxu0
        %v606 = vadd.f32 %v530, %v605
        %v607 = vpop.f32.mrf.mxu0
        %608 = vmatprep.mubr.f32.mxu0 0.0
        %609 = vmatmul.mubr.f32.gmra.mxu0 %v537
        %v610 = vpop.f32.mrf.mxu0
        %v611 = vadd.f32 %v530, %v610
        %v612 = vpop.f32.mrf.mxu0
        %613 = vdwg.mxu0
        %v614 = vmul.f32 %v606, 0.35355338
        %v615 = vmul.f32 %v611, 0.35355338
        %v616 = vld [vmem:[%s1] sm:$0xff]
        %v617 = vld [vmem:[%s1 + $0x8] sm:$0xff]
        %v618 = vld [vmem:[%s495] sm:$0xff]
        %v619 = vld [vmem:[%s495 + $0x8] sm:$0xff]
        %v620 = vld [vmem:[%s495 + $0x10] sm:$0xff]
        %v621 = vld [vmem:[%s495 + $0x18] sm:$0xff]
        %v622 = vld [vmem:[%s495 + $0x20] sm:$0xff]
        %v623 = vld [vmem:[%s495 + $0x28] sm:$0xff]
        %v624 = vld [vmem:[%s498] sm:$0x1]
        %v626 = vlaneseq
        %v627 = vshrl.u32 %v626, 7
        %v628 = vsub.s32 0, %v627
        %v629 = vrot.slane %v624, %v628
        %vm631 = vcmask 392192
        %v633 = vsel %vm631, %v616, 0
        %v636 = vsel %vm631, %v617, 0
        %638 = vmatprep.subr.mxu0 0.0
        %639 = vmatpush1.msra.mxu0 0.0
        %640 = vmatprep.subr.mxu0 0.0
        %641 = vmatpush1.msra.mxu0 0.0
        %642 = vmatprep.subr.mxu0 0.0
        %643 = vmatpush1.msra.mxu0 0.0
        %644 = vmatprep.subr.mxu0 0.0
        %645 = vmatpush1.msra.mxu0 0.0
        %646 = vmatprep.subr.mxu0 0.0
        %647 = vmatpush1.msra.mxu0 0.0
        %648 = vmatprep.subr.mxu0 0.0
        %649 = vmatpush1.msra.mxu0 0.0
        %650 = vmatprep.subr.mxu0 0.0
        %651 = vmatpush1.msra.mxu0 0.0
        %652 = vmatprep.subr.mxu0 0.0
        %653 = vmatpush1.msra.mxu0 0.0
        %654 = vmatprep.subr.mxu0 0.0
        %655 = vmatpush1.msra.mxu0 0.0
        %656 = vmatprep.subr.mxu0 0.0
        %657 = vmatpush1.msra.mxu0 0.0
        %658 = vmatprep.subr.mxu0 0.0
        %659 = vmatpush1.msra.mxu0 %v623
        %660 = vmatprep.subr.mxu0 0.0
        %661 = vmatpush1.msra.mxu0 %v622
        %662 = vmatprep.subr.mxu0 0.0
        %663 = vmatpush1.msra.mxu0 %v621
        %664 = vmatprep.subr.mxu0 0.0
        %665 = vmatpush1.msra.mxu0 %v620
        %666 = vmatprep.subr.mxu0 0.0
        %667 = vmatpush1.msra.mxu0 %v619
        %668 = vmatprep.subr.mxu0 0.0
        %669 = vmatpush1.msra.mxu0 %v618
        %670 = vmatprep.subr.mxu0 0.0
        %671 = vmatpush2.msra.mxu0 0.0
        %672 = vmatprep.subr.mxu0 0.0
        %673 = vmatpush2.msra.mxu0 0.0
        %674 = vmatprep.subr.mxu0 0.0
        %675 = vmatpush2.msra.mxu0 0.0
        %676 = vmatprep.subr.mxu0 0.0
        %677 = vmatpush2.msra.mxu0 0.0
        %678 = vmatprep.subr.mxu0 0.0
        %679 = vmatpush2.msra.mxu0 0.0
        %680 = vmatprep.subr.mxu0 0.0
        %681 = vmatpush2.msra.mxu0 0.0
        %682 = vmatprep.subr.mxu0 0.0
        %683 = vmatpush2.msra.mxu0 0.0
        %684 = vmatprep.subr.mxu0 0.0
        %685 = vmatpush2.msra.mxu0 0.0
        %686 = vmatprep.subr.mxu0 0.0
        %687 = vmatpush2.msra.mxu0 0.0
        %688 = vmatprep.subr.mxu0 0.0
        %689 = vmatpush2.msra.mxu0 0.0
        %690 = vmatprep.subr.mxu0 0.0
        %691 = vmatpush2.msra.mxu0 0.0
        %692 = vmatprep.subr.mxu0 0.0
        %693 = vmatpush2.msra.mxu0 0.0
        %694 = vmatprep.subr.mxu0 0.0
        %695 = vmatpush2.msra.mxu0 0.0
        %696 = vmatprep.subr.mxu0 0.0
        %697 = vmatpush2.msra.mxu0 0.0
        %698 = vmatprep.subr.mxu0 0.0
        %699 = vmatpush2.msra.mxu0 0.0
        %700 = vmatprep.subr.mxu0 0.0
        %701 = vmatpush2.msra.mxu0 0.0
        %702 = vmatprep.mubr.f32.mxu0 0.0
        %703 = vmatmul.mubr.f32.gmra.mxu0 %v633
        %v704 = vpop.f32.mrf.mxu0
        %v705 = vadd.f32 %v629, %v704
        %v706 = vpop.f32.mrf.mxu0
        %707 = vmatprep.mubr.f32.mxu0 0.0
        %708 = vmatmul.mubr.f32.gmra.mxu0 %v636
        %v709 = vpop.f32.mrf.mxu0
        %v710 = vadd.f32 %v629, %v709
        %v711 = vpop.f32.mrf.mxu0
        %712 = vdwg.mxu0
        %v713 = vld [vmem:[%s2] sm:$0xff]
        %v714 = vld [vmem:[%s2 + $0x8] sm:$0xff]
        %v715 = vld [vmem:[%s503] sm:$0xff]
        %v716 = vld [vmem:[%s503 + $0x8] sm:$0xff]
        %v717 = vld [vmem:[%s503 + $0x10] sm:$0xff]
        %v718 = vld [vmem:[%s503 + $0x18] sm:$0xff]
        %v719 = vld [vmem:[%s503 + $0x20] sm:$0xff]
        %v720 = vld [vmem:[%s503 + $0x28] sm:$0xff]
        %v721 = vld [vmem:[%s506] sm:$0x1]
        %v723 = vlaneseq
        %v724 = vshrl.u32 %v723, 7
        %v725 = vsub.s32 0, %v724
        %v726 = vrot.slane %v721, %v725
        %v729 = vsel %vm631, %v713, 0
        %v732 = vsel %vm631, %v714, 0
        %734 = vmatprep.subr.mxu0 0.0
        %735 = vmatpush1.msra.mxu0 0.0
        %736 = vmatprep.subr.mxu0 0.0
        %737 = vmatpush1.msra.mxu0 0.0
        %738 = vmatprep.subr.mxu0 0.0
        %739 = vmatpush1.msra.mxu0 0.0
        %740 = vmatprep.subr.mxu0 0.0
        %741 = vmatpush1.msra.mxu0 0.0
        %742 = vmatprep.subr.mxu0 0.0
        %743 = vmatpush1.msra.mxu0 0.0
        %744 = vmatprep.subr.mxu0 0.0
        %745 = vmatpush1.msra.mxu0 0.0
        %746 = vmatprep.subr.mxu0 0.0
        %747 = vmatpush1.msra.mxu0 0.0
        %748 = vmatprep.subr.mxu0 0.0
        %749 = vmatpush1.msra.mxu0 0.0
        %750 = vmatprep.subr.mxu0 0.0
        %751 = vmatpush1.msra.mxu0 0.0
        %752 = vmatprep.subr.mxu0 0.0
        %753 = vmatpush1.msra.mxu0 0.0
        %754 = vmatprep.subr.mxu0 0.0
        %755 = vmatpush1.msra.mxu0 %v720
        %756 = vmatprep.subr.mxu0 0.0
        %757 = vmatpush1.msra.mxu0 %v719
        %758 = vmatprep.subr.mxu0 0.0
        %759 = vmatpush1.msra.mxu0 %v718
        %760 = vmatprep.subr.mxu0 0.0
        %761 = vmatpush1.msra.mxu0 %v717
        %762 = vmatprep.subr.mxu0 0.0
        %763 = vmatpush1.msra.mxu0 %v716
        %764 = vmatprep.subr.mxu0 0.0
        %765 = vmatpush1.msra.mxu0 %v715
        %766 = vmatprep.subr.mxu0 0.0
        %767 = vmatpush2.msra.mxu0 0.0
        %768 = vmatprep.subr.mxu0 0.0
        %769 = vmatpush2.msra.mxu0 0.0
        %770 = vmatprep.subr.mxu0 0.0
        %771 = vmatpush2.msra.mxu0 0.0
        %772 = vmatprep.subr.mxu0 0.0
        %773 = vmatpush2.msra.mxu0 0.0
        %774 = vmatprep.subr.mxu0 0.0
        %775 = vmatpush2.msra.mxu0 0.0
        %776 = vmatprep.subr.mxu0 0.0
        %777 = vmatpush2.msra.mxu0 0.0
        %778 = vmatprep.subr.mxu0 0.0
        %779 = vmatpush2.msra.mxu0 0.0
        %780 = vmatprep.subr.mxu0 0.0
        %781 = vmatpush2.msra.mxu0 0.0
        %782 = vmatprep.subr.mxu0 0.0
        %783 = vmatpush2.msra.mxu0 0.0
        %784 = vmatprep.subr.mxu0 0.0
        %785 = vmatpush2.msra.mxu0 0.0
        %786 = vmatprep.subr.mxu0 0.0
        %787 = vmatpush2.msra.mxu0 0.0
        %788 = vmatprep.subr.mxu0 0.0
        %789 = vmatpush2.msra.mxu0 0.0
        %790 = vmatprep.subr.mxu0 0.0
        %791 = vmatpush2.msra.mxu0 0.0
        %792 = vmatprep.subr.mxu0 0.0
        %793 = vmatpush2.msra.mxu0 0.0
        %794 = vmatprep.subr.mxu0 0.0
        %795 = vmatpush2.msra.mxu0 0.0
        %796 = vmatprep.subr.mxu0 0.0
        %797 = vmatpush2.msra.mxu0 0.0
        %798 = vmatprep.mubr.f32.mxu0 0.0
        %799 = vmatmul.mubr.f32.gmra.mxu0 %v729
        %v800 = vpop.f32.mrf.mxu0
        %v801 = vadd.f32 %v726, %v800
        %v802 = vpop.f32.mrf.mxu0
        %803 = vmatprep.mubr.f32.mxu0 0.0
        %804 = vmatmul.mubr.f32.gmra.mxu0 %v732
        %v805 = vpop.f32.mrf.mxu0
        %v806 = vadd.f32 %v726, %v805
        %v807 = vpop.f32.mrf.mxu0
        %808 = vdwg.mxu0
        %vm809 = vcmask 64512
        %v811 = vsel %vm809, %v614, 0
        %v814 = vsel %vm809, %v615, 0
        %v817 = vsel %vm809, %v705, 0
        %v820 = vsel %vm809, %v710, 0
        %822 = vmatprep.subr.mxu0 0.0
        %823 = vmatpush1.xpose.msra.mxu0 0.0
        %824 = vmatprep.subr.mxu0 0.0
        %825 = vmatpush1.xpose.msra.mxu0 0.0
        %826 = vmatprep.subr.mxu0 0.0
        %827 = vmatpush1.xpose.msra.mxu0 0.0
        %828 = vmatprep.subr.mxu0 0.0
        %829 = vmatpush1.xpose.msra.mxu0 0.0
        %830 = vmatprep.subr.mxu0 0.0
        %831 = vmatpush1.xpose.msra.mxu0 0.0
        %832 = vmatprep.subr.mxu0 0.0
        %833 = vmatpush1.xpose.msra.mxu0 0.0
        %834 = vmatprep.subr.mxu0 0.0
        %835 = vmatpush1.xpose.msra.mxu0 0.0
        %836 = vmatprep.subr.mxu0 0.0
        %837 = vmatpush1.xpose.msra.mxu0 0.0
        %838 = vmatprep.subr.mxu0 0.0
        %839 = vmatpush1.xpose.msra.mxu0 0.0
        %840 = vmatprep.subr.mxu0 0.0
        %841 = vmatpush1.xpose.msra.mxu0 0.0
        %842 = vmatprep.subr.mxu0 0.0
        %843 = vmatpush1.xpose.msra.mxu0 0.0
        %844 = vmatprep.subr.mxu0 0.0
        %845 = vmatpush1.xpose.msra.mxu0 0.0
        %846 = vmatprep.subr.mxu0 0.0
        %847 = vmatpush1.xpose.msra.mxu0 0.0
        %848 = vmatprep.subr.mxu0 0.0
        %849 = vmatpush1.xpose.msra.mxu0 0.0
        %850 = vmatprep.subr.mxu0 0.0
        %851 = vmatpush1.xpose.msra.mxu0 %v820
        %852 = vmatprep.subr.mxu0 0.0
        %853 = vmatpush1.xpose.msra.mxu0 %v817
        %854 = vmatprep.subr.mxu0 0.0
        %855 = vmatpush2.xpose.msra.mxu0 0.0
        %856 = vmatprep.subr.mxu0 0.0
        %857 = vmatpush2.xpose.msra.mxu0 0.0
        %858 = vmatprep.subr.mxu0 0.0
        %859 = vmatpush2.xpose.msra.mxu0 0.0
        %860 = vmatprep.subr.mxu0 0.0
        %861 = vmatpush2.xpose.msra.mxu0 0.0
        %862 = vmatprep.subr.mxu0 0.0
        %863 = vmatpush2.xpose.msra.mxu0 0.0
        %864 = vmatprep.subr.mxu0 0.0
        %865 = vmatpush2.xpose.msra.mxu0 0.0
        %866 = vmatprep.subr.mxu0 0.0
        %867 = vmatpush2.xpose.msra.mxu0 0.0
        %868 = vmatprep.subr.mxu0 0.0
        %869 = vmatpush2.xpose.msra.mxu0 0.0
        %870 = vmatprep.subr.mxu0 0.0
        %871 = vmatpush2.xpose.msra.mxu0 0.0
        %872 = vmatprep.subr.mxu0 0.0
        %873 = vmatpush2.xpose.msra.mxu0 0.0
        %874 = vmatprep.subr.mxu0 0.0
        %875 = vmatpush2.xpose.msra.mxu0 0.0
        %876 = vmatprep.subr.mxu0 0.0
        %877 = vmatpush2.xpose.msra.mxu0 0.0
        %878 = vmatprep.subr.mxu0 0.0
        %879 = vmatpush2.xpose.msra.mxu0 0.0
        %880 = vmatprep.subr.mxu0 0.0
        %881 = vmatpush2.xpose.msra.mxu0 0.0
        %882 = vmatprep.subr.mxu0 0.0
        %883 = vmatpush2.xpose.msra.mxu0 0.0
        %884 = vmatprep.subr.mxu0 0.0
        %885 = vmatpush2.xpose.msra.mxu0 0.0
        %886 = vmatprep.mubr.f32.mxu0 0.0
        %887 = vmatmul.mubr.f32.gmra.mxu0 %v811
        %v888 = vpop.f32.mrf.mxu0
        %v889 = vadd.f32 0.0, %v888
        %v890 = vpop.f32.mrf.mxu0
        %891 = vmatprep.mubr.f32.mxu0 0.0
        %892 = vmatmul.mubr.f32.gmra.mxu0 %v814
        %v893 = vpop.f32.mrf.mxu0
        %v894 = vadd.f32 0.0, %v893
        %v895 = vpop.f32.mrf.mxu0
        %896 = vdwg.mxu0
        %vm897 = vcmask 130048
        %v898 = vsel %vm897, %v889, -inf
        %899 = vmax.xlane.f32.xlu0 %v898
        %v900 = vpop.xlane.xlu0 %899
        %v901 = vsel %vm897, %v894, -inf
        %902 = vmax.xlane.f32.xlu0 %v901
        %v903 = vpop.xlane.xlu0 %902
        %v904 = vsub.f32 %v889, %v900
        %v905 = vsub.f32 %v894, %v903
        %v906 = vmul.f32 %v904, 1.442695
        %v907 = vpow.pop %v906
        %v908 = vmul.f32 %v905, 1.442695
        %v909 = vpow.pop %v908
        %v910 = vsel %vm897, %v907, 0.0
        %911 = vadd.xlane.f32.xlu0 %v910
        %v912 = vpop.xlane.xlu0 %911
        %v913 = vsel %vm897, %v909, 0.0
        %914 = vadd.xlane.f32.xlu0 %v913
        %v915 = vpop.xlane.xlu0 %914
        %v917 = vsel %vm897, %v907, 0
        %v920 = vsel %vm897, %v909, 0
        %922 = vmatprep.subr.mxu0 0.0
        %923 = vmatpush1.msra.mxu0 0.0
        %924 = vmatprep.subr.mxu0 0.0
        %925 = vmatpush1.msra.mxu0 0.0
        %926 = vmatprep.subr.mxu0 0.0
        %927 = vmatpush1.msra.mxu0 0.0
        %928 = vmatprep.subr.mxu0 0.0
        %929 = vmatpush1.msra.mxu0 0.0
        %930 = vmatprep.subr.mxu0 0.0
        %931 = vmatpush1.msra.mxu0 0.0
        %932 = vmatprep.subr.mxu0 0.0
        %933 = vmatpush1.msra.mxu0 0.0
        %934 = vmatprep.subr.mxu0 0.0
        %935 = vmatpush1.msra.mxu0 0.0
        %936 = vmatprep.subr.mxu0 0.0
        %937 = vmatpush1.msra.mxu0 0.0
        %938 = vmatprep.subr.mxu0 0.0
        %939 = vmatpush1.msra.mxu0 0.0
        %940 = vmatprep.subr.mxu0 0.0
        %941 = vmatpush1.msra.mxu0 0.0
        %942 = vmatprep.subr.mxu0 0.0
        %943 = vmatpush1.msra.mxu0 0.0
        %944 = vmatprep.subr.mxu0 0.0
        %945 = vmatpush1.msra.mxu0 0.0
        %946 = vmatprep.subr.mxu0 0.0
        %947 = vmatpush1.msra.mxu0 0.0
        %948 = vmatprep.subr.mxu0 0.0
        %949 = vmatpush1.msra.mxu0 0.0
        %950 = vmatprep.subr.mxu0 0.0
        %951 = vmatpush1.msra.mxu0 %v806
        %952 = vmatprep.subr.mxu0 0.0
        %953 = vmatpush1.msra.mxu0 %v801
        %954 = vmatprep.subr.mxu0 0.0
        %955 = vmatpush2.msra.mxu0 0.0
        %956 = vmatprep.subr.mxu0 0.0
        %957 = vmatpush2.msra.mxu0 0.0
        %958 = vmatprep.subr.mxu0 0.0
        %959 = vmatpush2.msra.mxu0 0.0
        %960 = vmatprep.subr.mxu0 0.0
        %961 = vmatpush2.msra.mxu0 0.0
        %962 = vmatprep.subr.mxu0 0.0
        %963 = vmatpush2.msra.mxu0 0.0
        %964 = vmatprep.subr.mxu0 0.0
        %965 = vmatpush2.msra.mxu0 0.0
        %966 = vmatprep.subr.mxu0 0.0
        %967 = vmatpush2.msra.mxu0 0.0
        %968 = vmatprep.subr.mxu0 0.0
        %969 = vmatpush2.msra.mxu0 0.0
        %970 = vmatprep.subr.mxu0 0.0
        %971 = vmatpush2.msra.mxu0 0.0
        %972 = vmatprep.subr.mxu0 0.0
        %973 = vmatpush2.msra.mxu0 0.0
        %974 = vmatprep.subr.mxu0 0.0
        %975 = vmatpush2.msra.mxu0 0.0
        %976 = vmatprep.subr.mxu0 0.0
        %977 = vmatpush2.msra.mxu0 0.0
        %978 = vmatprep.subr.mxu0 0.0
        %979 = vmatpush2.msra.mxu0 0.0
        %980 = vmatprep.subr.mxu0 0.0
        %981 = vmatpush2.msra.mxu0 0.0
        %982 = vmatprep.subr.mxu0 0.0
        %983 = vmatpush2.msra.mxu0 0.0
        %984 = vmatprep.subr.mxu0 0.0
        %985 = vmatpush2.msra.mxu0 0.0
        %986 = vmatprep.mubr.f32.mxu0 0.0
        %987 = vmatmul.mubr.f32.gmra.mxu0 %v917
        %v988 = vpop.f32.mrf.mxu0
        %v989 = vadd.f32 0.0, %v988
        %v990 = vpop.f32.mrf.mxu0
        %991 = vmatprep.mubr.f32.mxu0 0.0
        %992 = vmatmul.mubr.f32.gmra.mxu0 %v920
        %v993 = vpop.f32.mrf.mxu0
        %v994 = vadd.f32 0.0, %v993
        %v995 = vpop.f32.mrf.mxu0
        %996 = vdwg.mxu0
        %v997 = vrcp.pop %v912
        %v998 = vmul.f32 1.0, %v997
        %v999 = vrcp.pop %v915
        %v1000 = vmul.f32 1.0, %v999
        %v1001 = vmul.f32 %v989, %v998
        %v1002 = vmul.f32 %v994, %v1000
        %v1003 = vld [vmem:[#allocation2] sm:$0xff]
        %v1004 = vld [vmem:[#allocation2 + $0x8] sm:$0xff]
        %v1005 = vld [vmem:[%s510] sm:$0xff]
        %v1007 = vsel %vm809, %v1001, 0
        %v1010 = vsel %vm809, %v1002, 0
        %1012 = vmatprep.subr.mxu0 0.0
        %1013 = vmatpush1.msra.mxu0 0.0
        %1014 = vmatprep.subr.mxu0 0.0
        %1015 = vmatpush1.msra.mxu0 0.0
        %1016 = vmatprep.subr.mxu0 0.0
        %1017 = vmatpush1.msra.mxu0 0.0
        %1018 = vmatprep.subr.mxu0 0.0
        %1019 = vmatpush1.msra.mxu0 0.0
        %1020 = vmatprep.subr.mxu0 0.0
        %1021 = vmatpush1.msra.mxu0 0.0
        %1022 = vmatprep.subr.mxu0 0.0
        %1023 = vmatpush1.msra.mxu0 0.0
        %1024 = vmatprep.subr.mxu0 0.0
        %1025 = vmatpush1.msra.mxu0 0.0
        %1026 = vmatprep.subr.mxu0 0.0
        %1027 = vmatpush1.msra.mxu0 0.0
        %1028 = vmatprep.subr.mxu0 0.0
        %1029 = vmatpush1.msra.mxu0 0.0
        %1030 = vmatprep.subr.mxu0 0.0
        %1031 = vmatpush1.msra.mxu0 0.0
        %1032 = vmatprep.subr.mxu0 0.0
        %1033 = vmatpush1.msra.mxu0 0.0
        %1034 = vmatprep.subr.mxu0 0.0
        %1035 = vmatpush1.msra.mxu0 0.0
        %1036 = vmatprep.subr.mxu0 0.0
        %1037 = vmatpush1.msra.mxu0 0.0
        %1038 = vmatprep.subr.mxu0 0.0
        %1039 = vmatpush1.msra.mxu0 0.0
        %1040 = vmatprep.subr.mxu0 0.0
        %1041 = vmatpush1.msra.mxu0 0.0
        %1042 = vmatprep.subr.mxu0 0.0
        %1043 = vmatpush1.msra.mxu0 %v1005
        %1044 = vmatprep.subr.mxu0 0.0
        %1045 = vmatpush2.msra.mxu0 0.0
        %1046 = vmatprep.subr.mxu0 0.0
        %1047 = vmatpush2.msra.mxu0 0.0
        %1048 = vmatprep.subr.mxu0 0.0
        %1049 = vmatpush2.msra.mxu0 0.0
        %1050 = vmatprep.subr.mxu0 0.0
        %1051 = vmatpush2.msra.mxu0 0.0
        %1052 = vmatprep.subr.mxu0 0.0
        %1053 = vmatpush2.msra.mxu0 0.0
        %1054 = vmatprep.subr.mxu0 0.0
        %1055 = vmatpush2.msra.mxu0 0.0
        %1056 = vmatprep.subr.mxu0 0.0
        %1057 = vmatpush2.msra.mxu0 0.0
        %1058 = vmatprep.subr.mxu0 0.0
        %1059 = vmatpush2.msra.mxu0 0.0
        %1060 = vmatprep.subr.mxu0 0.0
        %1061 = vmatpush2.msra.mxu0 0.0
        %1062 = vmatprep.subr.mxu0 0.0
        %1063 = vmatpush2.msra.mxu0 0.0
        %1064 = vmatprep.subr.mxu0 0.0
        %1065 = vmatpush2.msra.mxu0 0.0
        %1066 = vmatprep.subr.mxu0 0.0
        %1067 = vmatpush2.msra.mxu0 0.0
        %1068 = vmatprep.subr.mxu0 0.0
        %1069 = vmatpush2.msra.mxu0 0.0
        %1070 = vmatprep.subr.mxu0 0.0
        %1071 = vmatpush2.msra.mxu0 0.0
        %1072 = vmatprep.subr.mxu0 0.0
        %1073 = vmatpush2.msra.mxu0 0.0
        %1074 = vmatprep.subr.mxu0 0.0
        %1075 = vmatpush2.msra.mxu0 0.0
        %1076 = vmatprep.mubr.f32.mxu0 0.0
        %1077 = vmatmul.mubr.f32.gmra.mxu0 %v1007
        %v1078 = vpop.f32.mrf.mxu0
        %v1079 = vadd.f32 0.0, %v1078
        %v1080 = vpop.f32.mrf.mxu0
        %1081 = vmatprep.mubr.f32.mxu0 0.0
        %1082 = vmatmul.mubr.f32.gmra.mxu0 %v1010
        %v1083 = vpop.f32.mrf.mxu0
        %v1084 = vadd.f32 0.0, %v1083
        %v1085 = vpop.f32.mrf.mxu0
        %1086 = vdwg.mxu0
        %v1087 = vadd.f32 %v1003, %v1079
        %v1088 = vadd.f32 %v1004, %v1084
        %1089 = vst.msk [vmem:[#allocation2] sm:$0xff] %vm631, %v1087
        %1090 = vst.msk [vmem:[#allocation2 + $0x8] sm:$0xff] %vm631, %v1088
        %p1091 = scmp.eq.s32.totalorder %s28, 3
        // Predicated region
        $region69: #{tpu_custom_call.1} parent=63 // pred_check
          %p1092 = pneg %p1091
        $region70: #{tpu_custom_call.1} parent=63 // pred_check_branch
          %1094 = sbr.rel (%p1092) target = $region72
        $region71: #{tpu_custom_call.1} parent=63 // pred_region
          %v1095 = vld [vmem:[#allocation2] sm:$0xff]
          %v1096 = vld [vmem:[#allocation2 + $0x8] sm:$0xff]
          %v1097 = vld [vmem:[%s10] sm:$0x1]
          %v1099 = vlaneseq
          %v1100 = vshrl.u32 %v1099, 7
          %v1101 = vsub.s32 0, %v1100
          %v1102 = vrot.slane %v1097, %v1101
          %v1104 = vadd.f32 %v1095, %v1102
          %v1105 = vadd.f32 %v1096, %v1102
          %1106 = vst.msk [vmem:[#allocation3] sm:$0xff] %vm631, %v1104
          %1107 = vst.msk [vmem:[#allocation3 + $0x8] sm:$0xff] %vm631, %v1105
        $region72: #{tpu_custom_call.1} parent=63 // pred_fallthru
          _
        // Predicated region
        $region73: #{tpu_custom_call.1} parent=63 // pred_check
          %p1108 = pneg %p324
        $region74: #{tpu_custom_call.1} parent=63 // pred_check_branch
          %1110 = sbr.rel (%p1108) target = $region76
        $region75: #{tpu_custom_call.1} parent=63 // pred_region
          %s1111 = smul.u32 2, %s27
          %s1113 = ssub.s32 256, 256
          %1114 = vsyncadd [#allocation4], %s1113
          %s1115 = smul.addr %s1111, 128
          %s1116 = scalar_lea.hbm %s11, %s1115
          %s1117 = sshll.u32 [#allocation3], 4
          %s1118 = int_to_ptr.vmem [resolvable:$true] %s1117
          %1123 = dma.vmem_to_hbm [thread:$0]  %s1118, 256, %s1116, [#allocation4], 128, 128, 8
        $region76: #{tpu_custom_call.1} parent=63 // pred_fallthru
          _
        // Predicated region
        $region77: #{tpu_custom_call.1} parent=63 // pred_check
          %p1124 = pneg %p324
        $region78: #{tpu_custom_call.1} parent=63 // pred_check_branch
          %1126 = sbr.rel (%p1124) target = $region80
        $region79: #{tpu_custom_call.1} parent=63 // pred_region
          %1127 = dma.done [#allocation4], 256
        $region80: #{tpu_custom_call.1} parent=63 // pred_fallthru
          _
      $region64: #{tpu_custom_call.1} parent=5 // pred_fallthru
        _
      %p1128 = scmp.le.s32.totalorder 2, %s18
      // Predicated region
      $region81: #{tpu_custom_call.1} parent=5 // pred_check
        %p1129 = pneg %p1128
      $region82: #{tpu_custom_call.1} parent=5 // pred_check_branch
        %1131 = sbr.rel (%p1129) target = $region84
      $region83: #{tpu_custom_call.1} parent=5 // pred_region
        %s1132 = ssub.s32 %s18, 2
      $region84: #{tpu_custom_call.1} parent=5 // pred_fallthru
        _
    $region6: #{tpu_custom_call.1} parent=1 // loop_footer
      %s22 = sadd.s32 1, %s18
    $region7: #{tpu_custom_call.1} parent=1 // loop_footer_branch
      %17 = sbr.rel target = $region3
    $region8: #{tpu_custom_call.1} parent=1 // loop_exit
      _
    %1133 = vsyncpa [#allocation4], 1
    %s1134 = scalar_lea.sflag [#allocation4], 1
    %1135 = vsyncpa %s1134, 1

</llo_original>
